<compile_context>
chip_gen: v7x
topology: tpu7x:2x2x1
jax: 0.10.0
libtpu: 0.0.40
codegen_flags: <defaults>
</compile_context>

<pallas_src>
import jax
import jax.numpy as jnp
from jax import lax
from jax.experimental import pallas as pl
from jax.experimental.pallas import tpu as pltpu


_HALO = 8  # halo rows per side; 8 keeps every concat / slice sublane-tile aligned
assert _HALO >= 2, "opening needs >= 2 halo rows so the circular row-roll wrap is discarded"
assert _HALO % 8 == 0


def _make_kernel(H, W_real, W_pad, TH, threshold):
    thr = float(threshold)
    R = TH + 2 * _HALO                 # rows held per slab
    has_col_pad = W_pad != W_real
    needs_tile_mask = has_col_pad or (H % TH != 0)
    f32 = jnp.float32

    def kernel(de_ref, te_ref, dg_ref,
               de_top_ref, dg_top_ref, de_bot_ref, dg_bot_ref, out_ref):
        hi = pl.program_id(1)

        def trust(d_est, d_gt):
            # comparison done in f32 even for low-precision inputs
            return (jnp.abs(d_est.astype(f32) - d_gt.astype(f32)) < thr).astype(f32)

        # trust_gt on the row slab [hi*TH - 8, hi*TH + TH + 8); all pieces 8-row aligned.
        t_mid = trust(de_ref[0], dg_ref[0])                     # (TH, W)
        t_up = trust(de_top_ref[0], dg_top_ref[0])              # (8, W)
        t_dn = trust(de_bot_ref[0], dg_bot_ref[0])              # (8, W)
        t_raw = jnp.concatenate([t_up, t_mid, t_dn], axis=0)    # (R, W)

        # Out-of-image mask in global coordinates: covers the top/bottom image border,
        # the ragged tail tile (H % TH != 0) and any lane padding beyond the real width.
        row_ids = lax.broadcasted_iota(jnp.int32, (R, W_pad), 0)
        g_row = row_ids + (hi * TH - _HALO)
        invalid = (g_row < 0) | (g_row >= H)
        col_ids = lax.broadcasted_iota(jnp.int32, (R, W_pad), 1)
        if has_col_pad:
            invalid = invalid | (col_ids >= W_real)
        col_first = col_ids == 0
        col_last = col_ids == (W_real - 1)

        # ---- erosion: 3x3 min-pool; out-of-image neighbours ignored (fill = 1.0) ----
        t = jnp.where(invalid, 1.0, t_raw)
        tl = jnp.where(col_first, 1.0, pltpu.roll(t, shift=1, axis=1))        # left nbr
        tr = jnp.where(col_last, 1.0, pltpu.roll(t, shift=W_pad - 1, axis=1))  # right nbr
        c = jnp.minimum(jnp.minimum(tl, t), tr)                                # 1x3 min
        ero = jnp.minimum(jnp.minimum(pltpu.roll(c, shift=1, axis=0), c),
                          pltpu.roll(c, shift=R - 1, axis=0))                  # 3x1 min

        # ---- dilation: 3x3 max-pool; out-of-image neighbours ignored (fill = 0.0) ----
        e = jnp.where(invalid, 0.0, ero)
        el = jnp.where(col_first, 0.0, pltpu.roll(e, shift=1, axis=1))
        er = jnp.where(col_last, 0.0, pltpu.roll(e, shift=W_pad - 1, axis=1))
        d = jnp.maximum(jnp.maximum(el, e), er)                                # 1x3 max
        opened_slab = jnp.maximum(jnp.maximum(pltpu.roll(d, shift=1, axis=0), d),
                                  pltpu.roll(d, shift=R - 1, axis=0))          # 3x1 max
        opened = opened_slab[_HALO:_HALO + TH]          # aligned slice, (TH, W), binary

        # ---- masked BCE, single log via select (valid because `opened` is binary) ----
        te_t = te_ref[0].astype(f32)
        opened_b = opened > 0.5
        ignore = (opened_b & (te_t > 0.95)) | ((~opened_b) & (te_t < 0.05))
        if needs_tile_mask:
            ignore = ignore | invalid[_HALO:_HALO + TH]
        p_sel = jnp.where(opened_b, te_t, 1.0 - te_t)
        bce = -jnp.maximum(jnp.log(p_sel), -100.0)       # PyTorch BCE log clamp at -100
        bce = jnp.where(ignore, 0.0, bce)

        # Lane/sublane-preserving per-tile partial sum: (TH, W) -> (8, W) via VPU adds.
        out_ref[0] = jnp.sum(bce.reshape(TH // 8, 8, W_pad), axis=0)

    return kernel


def loss_wrapper_forward(depth_estimate, trust_estimate, color, depth_gt,
                         *, threshold, row_tile=512):
    """Equivalent of LossWrapper(threshold, DTU_filter=False).forward(
           (depth_estimate, trust_estimate), color, depth_gt)."""
    # TODO(synk): DTU_filter=True branch (9x9 close_L morphology + gray-scale gating on
    #             `color`) is not implemented; module default is DTU_filter=False.
    del color  # unused when DTU_filter=False

    N, C, H, W = depth_estimate.shape
    assert C == 1, "depth / trust maps are single-channel"

    # Native dtype for the DMA; cast happens inside the kernel (bf16 inputs welcome).
    de = depth_estimate.reshape(N, H, W)
    te = trust_estimate.reshape(N, H, W)
    dg = depth_gt.reshape(N, H, W)

    # Sublane/lane alignment: only copies when the maps are not already (8,128)-aligned.
    H8 = -(-H // 8) * 8
    W_pad = -(-W // 128) * 128
    if H8 != H or W_pad != W:
        # TODO(synk): ideally the producer emits aligned maps; this pad is an HBM copy.
        pad = ((0, 0), (0, H8 - H), (0, W_pad - W))
        de = jnp.pad(de, pad)
        te = jnp.pad(te, pad)
        dg = jnp.pad(dg, pad)

    # VMEM budget (v7x: 64 MiB physical; v5e/v6e: 128 MiB) and row-tile selection.
    try:
        vmem_cap = int(pltpu.get_tpu_info().vmem_capacity_bytes)
    except Exception:
        vmem_cap = 64 * 1024 * 1024
    vmem_budget = int(vmem_cap * 3 // 4)

    sz_tiles = de.dtype.itemsize + te.dtype.itemsize + dg.dtype.itemsize
    sz_halos = 2 * (de.dtype.itemsize + dg.dtype.itemsize)

    TH = min(max((int(row_tile) // 8) * 8, 8), H8)
    if N == 1 and H8 >= 16:
        # Keep the grid >= 2 steps so both v7x TensorCores get work even at batch 1.
        TH = min(TH, max(8, ((H8 // 2 + 7) // 8) * 8))
        if TH >= H8:
            TH = H8 - 8

    def _est(th):
        dbuf = 2 * (th * W_pad * sz_tiles          # double-buffered de/te/dg tiles
                    + 8 * W_pad * sz_halos         # 4x 8-row halo blocks
                    + 8 * W_pad * 4)               # output block
        slabs = 8 * (th + 2 * _HALO) * W_pad * 4   # live f32 slab temporaries (generous)
        return dbuf + slabs

    while TH > 8 and _est(TH) > vmem_budget:
        TH -= 8

    nH = -(-H // TH)              # cdiv over the REAL height; tail rows masked in-kernel
    tpb = TH // 8                 # tile height in 8-row halo blocks
    nHB = H8 // 8                 # number of 8-row blocks along (padded) H

    kernel = _make_kernel(H, W, W_pad, TH, threshold)

    tile_spec = pl.BlockSpec((1, TH, W_pad), lambda b, hi: (b, hi, 0))
    top_spec = pl.BlockSpec((1, 8, W_pad),
                            lambda b, hi: (b, jnp.maximum(hi * tpb - 1, 0), 0))
    bot_spec = pl.BlockSpec((1, 8, W_pad),
                            lambda b, hi: (b, jnp.minimum((hi + 1) * tpb, nHB - 1), 0))

    partials = pl.pallas_call(
        kernel,
        out_shape=jax.ShapeDtypeStruct((N * nH, 8, W_pad), jnp.float32),
        grid_spec=pltpu.PrefetchScalarGridSpec(
            num_scalar_prefetch=0,
            grid=(N, nH),
            in_specs=[tile_spec, tile_spec, tile_spec,   # de, te, dg tiles
                      top_spec, top_spec,                # de, dg top halos
                      bot_spec, bot_spec],               # de, dg bottom halos
            out_specs=pl.BlockSpec((1, 8, W_pad), lambda b, hi: (b * nH + hi, 0, 0)),
        ),
        compiler_params=pltpu.CompilerParams(
            dimension_semantics=("parallel", "parallel"),
            vmem_limit_bytes=int(vmem_budget)),
    )(de, te, dg, de, dg, de, dg)

    # Masked (invalid / ignored) pixels contribute exactly 0 to the partial sums.
    return jnp.sum(partials) / float(N * C * H * W)


def _reference(depth_estimate, trust_estimate, depth_gt, threshold):
    """Pure-JAX reference of the same math, for a sanity check."""
    de = depth_estimate[:, 0].astype(jnp.float32)
    te = trust_estimate[:, 0].astype(jnp.float32)
    dg = depth_gt[:, 0].astype(jnp.float32)
    trust_gt = (jnp.abs(de - dg) < threshold).astype(jnp.float32)

    def pool(x, red, fill):
        xp = jnp.pad(x, ((0, 0), (1, 1), (1, 1)), constant_values=fill)
        wins = [xp[:, dy:dy + x.shape[1], dx:dx + x.shape[2]]
                for dy in range(3) for dx in range(3)]
        out = wins[0]
        for w in wins[1:]:
            out = red(out, w)
        return out

    opened = pool(pool(trust_gt, jnp.minimum, jnp.inf), jnp.maximum, -jnp.inf)
    ignore = ((te > 0.95) & (opened == 1.0)) | ((te < 0.05) & (opened == 0.0))
    keep = 1.0 - ignore.astype(jnp.float32)
    t, p = opened * keep, te * keep
    log_p = jnp.maximum(jnp.log(p), -100.0)
    log_1mp = jnp.maximum(jnp.log(1.0 - p), -100.0)
    return jnp.mean(-(t * log_p + (1.0 - t) * log_1mp))


if __name__ == "__main__":
    key = jax.random.PRNGKey(0)
    threshold = 0.25

    def make(shape, kk):
        N, H, W = shape
        k1, k2, k3, k4 = jax.random.split(kk, 4)
        dg = jax.random.uniform(k1, (N, 1, H, W), jnp.float32, 0.0, 2.0)
        de = dg + 0.4 * jax.random.normal(k2, (N, 1, H, W), jnp.float32)
        te = jax.random.uniform(k3, (N, 1, H, W), jnp.float32, 1e-3, 1.0 - 1e-3)
        color = jax.random.uniform(k4, (N, 3, H, W), jnp.float32, 0.0, 255.0)  # unused
        return de, te, color, dg

    cases = [
        ((2, 32, 128), 16),    # multi-tile: exercises the row-halo exchange
        ((2, 32, 128), 512),   # one row tile per image
        ((2, 24, 192), 16),    # ragged: H % TH != 0 tail tile + W padded to 256 lanes
        ((1, 32, 128), 512),   # batch 1: wrapper must still emit >= 2 grid steps
    ]
    keys = jax.random.split(key, len(cases))
    for (shape, rt), kk in zip(cases, keys):
        de, te, color, dg = make(shape, kk)
        ref = _reference(de, te, dg, threshold)
        out = loss_wrapper_forward(de, te, color, dg, threshold=threshold, row_tile=rt)
        out = jax.block_until_ready(out)
        assert jnp.allclose(out, ref, rtol=1e-4, atol=1e-5), (shape, rt, out, ref)

    print("KERNEL_OK")
</pallas_src>

<mosaic_0001>
module attributes {stable_mosaic.version = 11 : i64} {
  func.func @kernel(%arg0: i32, %arg1: i32, %arg2: memref<1x16x128xf32, #tpu.memory_space<vmem>>, %arg3: memref<1x16x128xf32, #tpu.memory_space<vmem>>, %arg4: memref<1x16x128xf32, #tpu.memory_space<vmem>>, %arg5: memref<1x8x128xf32, #tpu.memory_space<vmem>>, %arg6: memref<1x8x128xf32, #tpu.memory_space<vmem>>, %arg7: memref<1x8x128xf32, #tpu.memory_space<vmem>>, %arg8: memref<1x8x128xf32, #tpu.memory_space<vmem>>, %arg9: memref<1x8x128xf32, #tpu.memory_space<vmem>>) attributes {dimension_semantics = [#tpu.dimension_semantics<parallel>, #tpu.dimension_semantics<parallel>], iteration_bounds = array<i64: 2, 2>, scalar_prefetch = 0 : i64, scratch_operands = 0 : i64, tpu.core_type = #tpu.core_type<tc>, window_params = [{transform_indices = @transform_0, window_bounds = array<i64: 1, 16, 128>}, {transform_indices = @transform_1, window_bounds = array<i64: 1, 16, 128>}, {transform_indices = @transform_2, window_bounds = array<i64: 1, 16, 128>}, {transform_indices = @transform_3, window_bounds = array<i64: 1, 8, 128>}, {transform_indices = @transform_4, window_bounds = array<i64: 1, 8, 128>}, {transform_indices = @transform_5, window_bounds = array<i64: 1, 8, 128>}, {transform_indices = @transform_6, window_bounds = array<i64: 1, 8, 128>}, {transform_indices = @transform_7, window_bounds = array<i64: 1, 8, 128>}]} {
    %c0 = arith.constant 0 : index
    %c0_0 = arith.constant 0 : index
    %c0_1 = arith.constant 0 : index
    %0 = vector.load %arg2[%c0, %c0_0, %c0_1] : memref<1x16x128xf32, #tpu.memory_space<vmem>>, vector<1x16x128xf32>
    %1 = vector.shape_cast %0 : vector<1x16x128xf32> to vector<16x128xf32>
    %c0_2 = arith.constant 0 : index
    %c0_3 = arith.constant 0 : index
    %c0_4 = arith.constant 0 : index
    %2 = vector.load %arg4[%c0_2, %c0_3, %c0_4] : memref<1x16x128xf32, #tpu.memory_space<vmem>>, vector<1x16x128xf32>
    %3 = vector.shape_cast %2 : vector<1x16x128xf32> to vector<16x128xf32>
    %4 = arith.subf %1, %3 : vector<16x128xf32>
    %5 = math.absf %4 : vector<16x128xf32>
    %cst = arith.constant 2.500000e-01 : f32
    %6 = vector.broadcast %cst : f32 to vector<16x128xf32>
    %7 = arith.cmpf olt, %5, %6 : vector<16x128xf32>
    %8 = arith.extui %7 : vector<16x128xi1> to vector<16x128xi32>
    %9 = arith.sitofp %8 : vector<16x128xi32> to vector<16x128xf32>
    %c0_5 = arith.constant 0 : index
    %c0_6 = arith.constant 0 : index
    %c0_7 = arith.constant 0 : index
    %10 = vector.load %arg5[%c0_5, %c0_6, %c0_7] : memref<1x8x128xf32, #tpu.memory_space<vmem>>, vector<1x8x128xf32>
    %11 = vector.shape_cast %10 : vector<1x8x128xf32> to vector<8x128xf32>
    %c0_8 = arith.constant 0 : index
    %c0_9 = arith.constant 0 : index
    %c0_10 = arith.constant 0 : index
    %12 = vector.load %arg6[%c0_8, %c0_9, %c0_10] : memref<1x8x128xf32, #tpu.memory_space<vmem>>, vector<1x8x128xf32>
    %13 = vector.shape_cast %12 : vector<1x8x128xf32> to vector<8x128xf32>
    %14 = arith.subf %11, %13 : vector<8x128xf32>
    %15 = math.absf %14 : vector<8x128xf32>
    %cst_11 = arith.constant 2.500000e-01 : f32
    %16 = vector.broadcast %cst_11 : f32 to vector<8x128xf32>
    %17 = arith.cmpf olt, %15, %16 : vector<8x128xf32>
    %18 = arith.extui %17 : vector<8x128xi1> to vector<8x128xi32>
    %19 = arith.sitofp %18 : vector<8x128xi32> to vector<8x128xf32>
    %c0_12 = arith.constant 0 : index
    %c0_13 = arith.constant 0 : index
    %c0_14 = arith.constant 0 : index
    %20 = vector.load %arg7[%c0_12, %c0_13, %c0_14] : memref<1x8x128xf32, #tpu.memory_space<vmem>>, vector<1x8x128xf32>
    %21 = vector.shape_cast %20 : vector<1x8x128xf32> to vector<8x128xf32>
    %c0_15 = arith.constant 0 : index
    %c0_16 = arith.constant 0 : index
    %c0_17 = arith.constant 0 : index
    %22 = vector.load %arg8[%c0_15, %c0_16, %c0_17] : memref<1x8x128xf32, #tpu.memory_space<vmem>>, vector<1x8x128xf32>
    %23 = vector.shape_cast %22 : vector<1x8x128xf32> to vector<8x128xf32>
    %24 = arith.subf %21, %23 : vector<8x128xf32>
    %25 = math.absf %24 : vector<8x128xf32>
    %cst_18 = arith.constant 2.500000e-01 : f32
    %26 = vector.broadcast %cst_18 : f32 to vector<8x128xf32>
    %27 = arith.cmpf olt, %25, %26 : vector<8x128xf32>
    %28 = arith.extui %27 : vector<8x128xi1> to vector<8x128xi32>
    %29 = arith.sitofp %28 : vector<8x128xi32> to vector<8x128xf32>
    %30 = tpu.concatenate %19, %9, %29 in 0 : vector<8x128xf32>, vector<16x128xf32>, vector<8x128xf32> -> vector<32x128xf32>
    %31 = tpu.iota {dimensions = array<i32: 0>} : vector<32x128xi32>
    %c16_i32 = arith.constant 16 : i32
    %32 = arith.muli %arg1, %c16_i32 : i32
    %c8_i32 = arith.constant 8 : i32
    %33 = arith.subi %32, %c8_i32 : i32
    %34 = vector.broadcast %33 : i32 to vector<32x128xi32>
    %35 = arith.addi %31, %34 : vector<32x128xi32>
    %c0_i32 = arith.constant 0 : i32
    %36 = vector.broadcast %c0_i32 : i32 to vector<32x128xi32>
    %37 = arith.cmpi slt, %35, %36 : vector<32x128xi32>
    %c32_i32 = arith.constant 32 : i32
    %38 = vector.broadcast %c32_i32 : i32 to vector<32x128xi32>
    %39 = arith.cmpi sge, %35, %38 : vector<32x128xi32>
    %40 = arith.ori %37, %39 : vector<32x128xi1>
    %41 = tpu.iota {dimensions = array<i32: 1>} : vector<32x128xi32>
    %c0_i32_19 = arith.constant 0 : i32
    %42 = vector.broadcast %c0_i32_19 : i32 to vector<32x128xi32>
    %43 = arith.cmpi eq, %41, %42 : vector<32x128xi32>
    %c127_i32 = arith.constant 127 : i32
    %44 = vector.broadcast %c127_i32 : i32 to vector<32x128xi32>
    %45 = arith.cmpi eq, %41, %44 : vector<32x128xi32>
    %cst_20 = arith.constant 1.000000e+00 : f32
    %46 = vector.broadcast %cst_20 : f32 to vector<32x128xf32>
    %47 = arith.select %40, %46, %30 : vector<32x128xi1>, vector<32x128xf32>
    %c1_i32 = arith.constant 1 : i32
    %48 = tpu.dynamic_rotate %47 by %c1_i32 dim 1 : vector<32x128xf32>, i32 -> vector<32x128xf32>
    %cst_21 = arith.constant 1.000000e+00 : f32
    %49 = vector.broadcast %cst_21 : f32 to vector<32x128xf32>
    %50 = arith.select %43, %49, %48 : vector<32x128xi1>, vector<32x128xf32>
    %c127_i32_22 = arith.constant 127 : i32
    %51 = tpu.dynamic_rotate %47 by %c127_i32_22 dim 1 : vector<32x128xf32>, i32 -> vector<32x128xf32>
    %cst_23 = arith.constant 1.000000e+00 : f32
    %52 = vector.broadcast %cst_23 : f32 to vector<32x128xf32>
    %53 = arith.select %45, %52, %51 : vector<32x128xi1>, vector<32x128xf32>
    %54 = arith.minimumf %50, %47 : vector<32x128xf32>
    %55 = arith.minimumf %54, %53 : vector<32x128xf32>
    %c1_i32_24 = arith.constant 1 : i32
    %56 = tpu.dynamic_rotate %55 by %c1_i32_24 dim 0 : vector<32x128xf32>, i32 -> vector<32x128xf32>
    %57 = arith.minimumf %56, %55 : vector<32x128xf32>
    %c31_i32 = arith.constant 31 : i32
    %58 = tpu.dynamic_rotate %55 by %c31_i32 dim 0 : vector<32x128xf32>, i32 -> vector<32x128xf32>
    %59 = arith.minimumf %57, %58 : vector<32x128xf32>
    %cst_25 = arith.constant 0.000000e+00 : f32
    %60 = vector.broadcast %cst_25 : f32 to vector<32x128xf32>
    %61 = arith.select %40, %60, %59 : vector<32x128xi1>, vector<32x128xf32>
    %c1_i32_26 = arith.constant 1 : i32
    %62 = tpu.dynamic_rotate %61 by %c1_i32_26 dim 1 : vector<32x128xf32>, i32 -> vector<32x128xf32>
    %cst_27 = arith.constant 0.000000e+00 : f32
    %63 = vector.broadcast %cst_27 : f32 to vector<32x128xf32>
    %64 = arith.select %43, %63, %62 : vector<32x128xi1>, vector<32x128xf32>
    %c127_i32_28 = arith.constant 127 : i32
    %65 = tpu.dynamic_rotate %61 by %c127_i32_28 dim 1 : vector<32x128xf32>, i32 -> vector<32x128xf32>
    %cst_29 = arith.constant 0.000000e+00 : f32
    %66 = vector.broadcast %cst_29 : f32 to vector<32x128xf32>
    %67 = arith.select %45, %66, %65 : vector<32x128xi1>, vector<32x128xf32>
    %68 = arith.maximumf %64, %61 : vector<32x128xf32>
    %69 = arith.maximumf %68, %67 : vector<32x128xf32>
    %c1_i32_30 = arith.constant 1 : i32
    %70 = tpu.dynamic_rotate %69 by %c1_i32_30 dim 0 : vector<32x128xf32>, i32 -> vector<32x128xf32>
    %71 = arith.maximumf %70, %69 : vector<32x128xf32>
    %c31_i32_31 = arith.constant 31 : i32
    %72 = tpu.dynamic_rotate %69 by %c31_i32_31 dim 0 : vector<32x128xf32>, i32 -> vector<32x128xf32>
    %73 = arith.maximumf %71, %72 : vector<32x128xf32>
    %74 = vector.extract_strided_slice %73 {offsets = [8, 0], sizes = [16, 128], strides = [1, 1]} : vector<32x128xf32> to vector<16x128xf32>
    %c0_32 = arith.constant 0 : index
    %c0_33 = arith.constant 0 : index
    %c0_34 = arith.constant 0 : index
    %75 = vector.load %arg3[%c0_32, %c0_33, %c0_34] : memref<1x16x128xf32, #tpu.memory_space<vmem>>, vector<1x16x128xf32>
    %76 = vector.shape_cast %75 : vector<1x16x128xf32> to vector<16x128xf32>
    %cst_35 = arith.constant 5.000000e-01 : f32
    %77 = vector.broadcast %cst_35 : f32 to vector<16x128xf32>
    %78 = arith.cmpf ogt, %74, %77 : vector<16x128xf32>
    %cst_36 = arith.constant 0.949999988 : f32
    %79 = vector.broadcast %cst_36 : f32 to vector<16x128xf32>
    %80 = arith.cmpf ogt, %76, %79 : vector<16x128xf32>
    %81 = arith.andi %78, %80 : vector<16x128xi1>
    %cst_37 = arith.constant dense<true> : vector<16x128xi1>
    %82 = arith.xori %78, %cst_37 : vector<16x128xi1>
    %cst_38 = arith.constant 5.000000e-02 : f32
    %83 = vector.broadcast %cst_38 : f32 to vector<16x128xf32>
    %84 = arith.cmpf olt, %76, %83 : vector<16x128xf32>
    %85 = arith.andi %82, %84 : vector<16x128xi1>
    %86 = arith.ori %81, %85 : vector<16x128xi1>
    %cst_39 = arith.constant 1.000000e+00 : f32
    %87 = vector.broadcast %cst_39 : f32 to vector<16x128xf32>
    %88 = arith.subf %87, %76 : vector<16x128xf32>
    %89 = arith.select %78, %76, %88 : vector<16x128xi1>, vector<16x128xf32>
    %90 = math.log %89 : vector<16x128xf32>
    %cst_40 = arith.constant -1.000000e+02 : f32
    %91 = vector.broadcast %cst_40 : f32 to vector<16x128xf32>
    %92 = arith.maximumf %90, %91 : vector<16x128xf32>
    %cst_41 = arith.constant 0.000000e+00 : f32
    %93 = vector.broadcast %cst_41 : f32 to vector<16x128xf32>
    %94 = arith.subf %93, %92 : vector<16x128xf32>
    %cst_42 = arith.constant 0.000000e+00 : f32
    %95 = vector.broadcast %cst_42 : f32 to vector<16x128xf32>
    %96 = arith.select %86, %95, %94 : vector<16x128xi1>, vector<16x128xf32>
    %97 = vector.shape_cast %96 : vector<16x128xf32> to vector<2x8x128xf32>
    %cst_43 = arith.constant dense<0.000000e+00> : vector<8x128xf32>
    %98 = vector.multi_reduction <add>, %97, %cst_43 [0] : vector<2x8x128xf32> to vector<8x128xf32>
    %c0_44 = arith.constant 0 : index
    %c0_45 = arith.constant 0 : index
    %c0_46 = arith.constant 0 : index
    %99 = vector.load %arg9[%c0_44, %c0_45, %c0_46] : memref<1x8x128xf32, #tpu.memory_space<vmem>>, vector<1x8x128xf32>
    %100 = vector.shape_cast %99 : vector<1x8x128xf32> to vector<8x128xf32>
    %101 = vector.shape_cast %98 : vector<8x128xf32> to vector<1x8x128xf32>
    tpu.vector_store %arg9[%c0_44, %c0_45, %c0_46], %101 {strides = array<i32>} : memref<1x8x128xf32, #tpu.memory_space<vmem>>, vector<1x8x128xf32>,
    return
  }
  func.func @transform_0(%arg0: i32, %arg1: i32) -> (i32, i32, i32) {
    %c0_i32 = arith.constant 0 : i32
    %c0_i32_0 = arith.constant 0 : i32
    return %arg0, %arg1, %c0_i32 : i32, i32, i32
  }
  func.func @transform_1(%arg0: i32, %arg1: i32) -> (i32, i32, i32) {
    %c0_i32 = arith.constant 0 : i32
    %c0_i32_0 = arith.constant 0 : i32
    return %arg0, %arg1, %c0_i32 : i32, i32, i32
  }
  func.func @transform_2(%arg0: i32, %arg1: i32) -> (i32, i32, i32) {
    %c0_i32 = arith.constant 0 : i32
    %c0_i32_0 = arith.constant 0 : i32
    return %arg0, %arg1, %c0_i32 : i32, i32, i32
  }
  func.func @transform_3(%arg0: i32, %arg1: i32) -> (i32, i32, i32) {
    %c2_i32 = arith.constant 2 : i32
    %0 = arith.muli %arg1, %c2_i32 : i32
    %c1_i32 = arith.constant 1 : i32
    %1 = arith.subi %0, %c1_i32 : i32
    %c0_i32 = arith.constant 0 : i32
    %2 = arith.maxsi %1, %c0_i32 : i32
    %c0_i32_0 = arith.constant 0 : i32
    %c0_i32_1 = arith.constant 0 : i32
    return %arg0, %2, %c0_i32_0 : i32, i32, i32
  }
  func.func @transform_4(%arg0: i32, %arg1: i32) -> (i32, i32, i32) {
    %c2_i32 = arith.constant 2 : i32
    %0 = arith.muli %arg1, %c2_i32 : i32
    %c1_i32 = arith.constant 1 : i32
    %1 = arith.subi %0, %c1_i32 : i32
    %c0_i32 = arith.constant 0 : i32
    %2 = arith.maxsi %1, %c0_i32 : i32
    %c0_i32_0 = arith.constant 0 : i32
    %c0_i32_1 = arith.constant 0 : i32
    return %arg0, %2, %c0_i32_0 : i32, i32, i32
  }
  func.func @transform_5(%arg0: i32, %arg1: i32) -> (i32, i32, i32) {
    %c1_i32 = arith.constant 1 : i32
    %0 = arith.addi %arg1, %c1_i32 : i32
    %c2_i32 = arith.constant 2 : i32
    %1 = arith.muli %0, %c2_i32 : i32
    %c3_i32 = arith.constant 3 : i32
    %2 = arith.minsi %1, %c3_i32 : i32
    %c0_i32 = arith.constant 0 : i32
    %c0_i32_0 = arith.constant 0 : i32
    return %arg0, %2, %c0_i32 : i32, i32, i32
  }
  func.func @transform_6(%arg0: i32, %arg1: i32) -> (i32, i32, i32) {
    %c1_i32 = arith.constant 1 : i32
    %0 = arith.addi %arg1, %c1_i32 : i32
    %c2_i32 = arith.constant 2 : i32
    %1 = arith.muli %0, %c2_i32 : i32
    %c3_i32 = arith.constant 3 : i32
    %2 = arith.minsi %1, %c3_i32 : i32
    %c0_i32 = arith.constant 0 : i32
    %c0_i32_0 = arith.constant 0 : i32
    return %arg0, %2, %c0_i32 : i32, i32, i32
  }
  func.func @transform_7(%arg0: i32, %arg1: i32) -> (i32, i32, i32) {
    %c2_i32 = arith.constant 2 : i32
    %0 = arith.muli %arg0, %c2_i32 : i32
    %1 = arith.addi %0, %arg1 : i32
    %c0_i32 = arith.constant 0 : i32
    %c0_i32_0 = arith.constant 0 : i32
    %c0_i32_1 = arith.constant 0 : i32
    return %1, %c0_i32, %c0_i32_0 : i32, i32, i32
  }
}

</mosaic_0001>

<llo_original>
// kernel: tpu_custom_call.1
$region0: #{tpu_custom_call.1}
  #allocation0 [shape = 'u32[]', space=smem, size = 0x4, offset = 0x4, fixed_abs, tag = 'smem constant byte address 0x4 - core index']
  #allocation1 [shape = 'u32[144,128]{1,0:T(1,128)}', space=vmem, size = 0x12000, scoped, tag = 'internal scratch']
  %s0 = inlined_call_operand.hbm [shape: f32[2,32,128], index: 0, kind: input, shape index: {}]
  %s1 = inlined_call_operand.hbm [shape: f32[2,32,128], index: 1, kind: input, shape index: {}]
  %s2 = inlined_call_operand.hbm [shape: f32[2,32,128], index: 2, kind: input, shape index: {}]
  %s3 = inlined_call_operand.hbm [shape: f32[2,32,128], index: 3, kind: input, shape index: {}]
  %s4 = inlined_call_operand.hbm [shape: f32[2,32,128], index: 4, kind: input, shape index: {}]
  %s5 = inlined_call_operand.hbm [shape: f32[2,32,128], index: 5, kind: input, shape index: {}]
  %s6 = inlined_call_operand.hbm [shape: f32[2,32,128], index: 6, kind: input, shape index: {}]
  %s7 = inlined_call_operand.hbm [shape: f32[4,8,128], index: 7, kind: output, shape index: {}]
  %s8 = sld [smem:[#allocation0]]
  $region89: #{tpu_custom_call.1} parent=0
    _
  %s10 = ssub.s32 1, %s8
  %s11 = scalar_select 0, %s10, %s8
  $region1: #{tpu_custom_call.1} parent=0
    #allocation2 [shape = 'u8[16384]{0}', space=vmem, size = 0x4000, scoped, tag = 'input window, operand 0']
    #allocation3 [shape = 's32[2]{0}', space=sflag, size = 0x8, scoped, tag = 'scoped memory for tpu_custom_call.1']
    #allocation4 [shape = 's32[2]{0}', space=sflag, size = 0x8, scoped, tag = 'scoped memory for tpu_custom_call.1']
    #allocation5 [shape = 'u8[16384]{0}', space=vmem, size = 0x4000, scoped, tag = 'input window, operand 1']
    #allocation6 [shape = 's32[2]{0}', space=sflag, size = 0x8, scoped, tag = 'scoped memory for tpu_custom_call.1']
    #allocation7 [shape = 'u8[16384]{0}', space=vmem, size = 0x4000, scoped, tag = 'input window, operand 2']
    #allocation8 [shape = 'u8[8192]{0}', space=vmem, size = 0x2000, scoped, tag = 'input window, operand 3']
    #allocation9 [shape = 's32[2]{0}', space=sflag, size = 0x8, scoped, tag = 'scoped memory for tpu_custom_call.1']
    #allocation10 [shape = 'u8[8192]{0}', space=vmem, size = 0x2000, scoped, tag = 'input window, operand 4']
    #allocation11 [shape = 'u8[8192]{0}', space=vmem, size = 0x2000, scoped, tag = 'input window, operand 5']
    #allocation12 [shape = 's32[2]{0}', space=sflag, size = 0x8, scoped, tag = 'scoped memory for tpu_custom_call.1']
    #allocation13 [shape = 'u8[8192]{0}', space=vmem, size = 0x2000, scoped, tag = 'input window, operand 6']
    #allocation14 [shape = 'u8[8192]{0}', space=vmem, size = 0x2000, scoped, tag = 'output window, operand 0']
    %12 = vsyncpa [#allocation3], 0
    %s13 = scalar_lea.sflag [#allocation3], 1
    %14 = vsyncpa %s13, 0
    %15 = vsyncpa [#allocation6], 0
    %s16 = scalar_lea.sflag [#allocation6], 1
    %17 = vsyncpa %s16, 0
    %18 = vsyncpa [#allocation9], 0
    %s19 = scalar_lea.sflag [#allocation9], 1
    %20 = vsyncpa %s19, 0
    %21 = vsyncpa [#allocation12], 0
    %s22 = scalar_lea.sflag [#allocation12], 1
    %23 = vsyncpa %s22, 0
    %24 = vsyncpa [#allocation4], 0
    %s25 = scalar_lea.sflag [#allocation4], 1
    %26 = vsyncpa %s25, 0
    loop: start=0, step=1, limit=6
    $region2: #{tpu_custom_call.1} parent=1 // loop_pre_header
      _
    $region3: #{tpu_custom_call.1} parent=1 // loop_header
      %s28 = sphi 0, %s32
      %p29 = scmp.ge.s32.totalorder %s28, 6
      %s35 = sphi 0, %s47
      %s36 = sphi 0, %s43
      %s37 = sphi 0, %s35
      %s38 = sphi 0, %s36
      %s39 = sphi 0, %s37
      %s40 = sphi 0, %s38
      %s52 = sphi 0, %s54
      %s55 = sphi 0, %s52
      %s56 = sphi 0, %s55
      %s72 = sphi 0, %s56
      %s80 = sphi 0, %s82
      %s83 = sphi 0, %s80
      %s84 = sphi 0, %s83
      %s100 = sphi 0, %s84
      %s108 = sphi 0, %s110
      %s111 = sphi 0, %s108
      %s112 = sphi 0, %s111
      %s128 = sphi 0, %s112
      %s144 = sphi 0, %s146
      %s147 = sphi 0, %s144
      %s148 = sphi 0, %s147
      %s164 = sphi 0, %s148
      %s180 = sphi 0, %s182
      %s183 = sphi 0, %s180
      %s184 = sphi 0, %s183
      %s200 = sphi 0, %s184
      %s216 = sphi 0, %s218
      %s219 = sphi 0, %s216
      %s220 = sphi 0, %s219
      %s236 = sphi 0, %s220
      %s252 = sphi 0, %s254
      %s255 = sphi 0, %s252
      %s256 = sphi 0, %s255
      %s272 = sphi 0, %s256
      %s282 = sphi 0, %s284
      %s285 = sphi 0, %s282
      %s286 = sphi 0, %s285
      %s302 = sphi 0, %s286
    $region4: #{tpu_custom_call.1} parent=1 // loop_header_branch
      %31 = sbr.rel (%p29) target = $region8
    $region5: #{tpu_custom_call.1} parent=1 // loop_body
      %s33 = ssub.s32 %s28, 1
      %s34 = ssub.s32 %s28, 2
      %s41 = sadd.s32 1, %s36
      %p42 = scmp.ge.s32.totalorder %s41, 2
      %s43 = scalar_select %p42, 0, %s41
      %s44 = sadd.s32 1, %s35
      %s45 = scalar_select %p42, %s44, %s35
      %p46 = scmp.ge.s32.totalorder %s45, 2
      %s47 = scalar_select %p46, 0, %s45
      %s48 = ssub.s32 %s35, %s47
      %s49 = ssub.s32 %s36, %s43
      %s50 = sor.u32 %s48, %s49
      %p51 = scmp.eq.s32.totalorder %s50, 0
      %s53 = sadd.s32 %s52, 1
      %s54 = scalar_select %p51, %s52, %s53
      %p57 = pneg %p51
      %p58 = scmp.eq.s32.totalorder %s28, 3
      %p59 = por %p57, %p58
      %p60 = scmp.ne.s32.totalorder %s52, %s55
      %p61 = scmp.eq.s32.totalorder %s28, 0
      %p62 = por %p60, %p61
      %p63 = scmp.ne.s32.totalorder %s52, %s55
      %p64 = scmp.eq.s32.totalorder %s33, 3
      %p65 = por %p63, %p64
      %p66 = scmp.ne.s32.totalorder %s55, %s56
      %p67 = scmp.eq.s32.totalorder %s33, 0
      %p68 = por %p66, %p67
      %p69 = scmp.ne.s32.totalorder %s55, %s56
      %p70 = scmp.eq.s32.totalorder %s34, 3
      %p71 = por %p69, %p70
      %p73 = scmp.ne.s32.totalorder %s56, %s72
      %p74 = scmp.eq.s32.totalorder %s34, 0
      %p75 = por %p73, %p74
      %s76 = ssub.s32 %s35, %s47
      %s77 = ssub.s32 %s36, %s43
      %s78 = sor.u32 %s76, %s77
      %p79 = scmp.eq.s32.totalorder %s78, 0
      %s81 = sadd.s32 %s80, 1
      %s82 = scalar_select %p79, %s80, %s81
      %p85 = pneg %p79
      %p86 = scmp.eq.s32.totalorder %s28, 3
      %p87 = por %p85, %p86
      %p88 = scmp.ne.s32.totalorder %s80, %s83
      %p89 = scmp.eq.s32.totalorder %s28, 0
      %p90 = por %p88, %p89
      %p91 = scmp.ne.s32.totalorder %s80, %s83
      %p92 = scmp.eq.s32.totalorder %s33, 3
      %p93 = por %p91, %p92
      %p94 = scmp.ne.s32.totalorder %s83, %s84
      %p95 = scmp.eq.s32.totalorder %s33, 0
      %p96 = por %p94, %p95
      %p97 = scmp.ne.s32.totalorder %s83, %s84
      %p98 = scmp.eq.s32.totalorder %s34, 3
      %p99 = por %p97, %p98
      %p101 = scmp.ne.s32.totalorder %s84, %s100
      %p102 = scmp.eq.s32.totalorder %s34, 0
      %p103 = por %p101, %p102
      %s104 = ssub.s32 %s35, %s47
      %s105 = ssub.s32 %s36, %s43
      %s106 = sor.u32 %s104, %s105
      %p107 = scmp.eq.s32.totalorder %s106, 0
      %s109 = sadd.s32 %s108, 1
      %s110 = scalar_select %p107, %s108, %s109
      %p113 = pneg %p107
      %p114 = scmp.eq.s32.totalorder %s28, 3
      %p115 = por %p113, %p114
      %p116 = scmp.ne.s32.totalorder %s108, %s111
      %p117 = scmp.eq.s32.totalorder %s28, 0
      %p118 = por %p116, %p117
      %p119 = scmp.ne.s32.totalorder %s108, %s111
      %p120 = scmp.eq.s32.totalorder %s33, 3
      %p121 = por %p119, %p120
      %p122 = scmp.ne.s32.totalorder %s111, %s112
      %p123 = scmp.eq.s32.totalorder %s33, 0
      %p124 = por %p122, %p123
      %p125 = scmp.ne.s32.totalorder %s111, %s112
      %p126 = scmp.eq.s32.totalorder %s34, 3
      %p127 = por %p125, %p126
      %p129 = scmp.ne.s32.totalorder %s112, %s128
      %p130 = scmp.eq.s32.totalorder %s34, 0
      %p131 = por %p129, %p130
      %s132 = smul.u32 %s36, 2
      %s133 = ssub.s32 %s132, 1
      %p134 = scmp.gt.s32.totalorder %s133, 0
      %s135 = scalar_select %p134, %s133, 0
      %s136 = smul.u32 %s43, 2
      %s137 = ssub.s32 %s136, 1
      %p138 = scmp.gt.s32.totalorder %s137, 0
      %s139 = scalar_select %p138, %s137, 0
      %s140 = ssub.s32 %s35, %s47
      %s141 = ssub.s32 %s135, %s139
      %s142 = sor.u32 %s140, %s141
      %p143 = scmp.eq.s32.totalorder %s142, 0
      %s145 = sadd.s32 %s144, 1
      %s146 = scalar_select %p143, %s144, %s145
      %p149 = pneg %p143
      %p150 = scmp.eq.s32.totalorder %s28, 3
      %p151 = por %p149, %p150
      %p152 = scmp.ne.s32.totalorder %s144, %s147
      %p153 = scmp.eq.s32.totalorder %s28, 0
      %p154 = por %p152, %p153
      %p155 = scmp.ne.s32.totalorder %s144, %s147
      %p156 = scmp.eq.s32.totalorder %s33, 3
      %p157 = por %p155, %p156
      %p158 = scmp.ne.s32.totalorder %s147, %s148
      %p159 = scmp.eq.s32.totalorder %s33, 0
      %p160 = por %p158, %p159
      %p161 = scmp.ne.s32.totalorder %s147, %s148
      %p162 = scmp.eq.s32.totalorder %s34, 3
      %p163 = por %p161, %p162
      %p165 = scmp.ne.s32.totalorder %s148, %s164
      %p166 = scmp.eq.s32.totalorder %s34, 0
      %p167 = por %p165, %p166
      %s168 = smul.u32 %s36, 2
      %s169 = ssub.s32 %s168, 1
      %p170 = scmp.gt.s32.totalorder %s169, 0
      %s171 = scalar_select %p170, %s169, 0
      %s172 = smul.u32 %s43, 2
      %s173 = ssub.s32 %s172, 1
      %p174 = scmp.gt.s32.totalorder %s173, 0
      %s175 = scalar_select %p174, %s173, 0
      %s176 = ssub.s32 %s35, %s47
      %s177 = ssub.s32 %s171, %s175
      %s178 = sor.u32 %s176, %s177
      %p179 = scmp.eq.s32.totalorder %s178, 0
      %s181 = sadd.s32 %s180, 1
      %s182 = scalar_select %p179, %s180, %s181
      %p185 = pneg %p179
      %p186 = scmp.eq.s32.totalorder %s28, 3
      %p187 = por %p185, %p186
      %p188 = scmp.ne.s32.totalorder %s180, %s183
      %p189 = scmp.eq.s32.totalorder %s28, 0
      %p190 = por %p188, %p189
      %p191 = scmp.ne.s32.totalorder %s180, %s183
      %p192 = scmp.eq.s32.totalorder %s33, 3
      %p193 = por %p191, %p192
      %p194 = scmp.ne.s32.totalorder %s183, %s184
      %p195 = scmp.eq.s32.totalorder %s33, 0
      %p196 = por %p194, %p195
      %p197 = scmp.ne.s32.totalorder %s183, %s184
      %p198 = scmp.eq.s32.totalorder %s34, 3
      %p199 = por %p197, %p198
      %p201 = scmp.ne.s32.totalorder %s184, %s200
      %p202 = scmp.eq.s32.totalorder %s34, 0
      %p203 = por %p201, %p202
      %s204 = sadd.s32 %s36, 1
      %s205 = smul.u32 %s204, 2
      %p206 = scmp.lt.s32.totalorder %s205, 3
      %s207 = scalar_select %p206, %s205, 3
      %s208 = sadd.s32 %s43, 1
      %s209 = smul.u32 %s208, 2
      %p210 = scmp.lt.s32.totalorder %s209, 3
      %s211 = scalar_select %p210, %s209, 3
      %s212 = ssub.s32 %s35, %s47
      %s213 = ssub.s32 %s207, %s211
      %s214 = sor.u32 %s212, %s213
      %p215 = scmp.eq.s32.totalorder %s214, 0
      %s217 = sadd.s32 %s216, 1
      %s218 = scalar_select %p215, %s216, %s217
      %p221 = pneg %p215
      %p222 = scmp.eq.s32.totalorder %s28, 3
      %p223 = por %p221, %p222
      %p224 = scmp.ne.s32.totalorder %s216, %s219
      %p225 = scmp.eq.s32.totalorder %s28, 0
      %p226 = por %p224, %p225
      %p227 = scmp.ne.s32.totalorder %s216, %s219
      %p228 = scmp.eq.s32.totalorder %s33, 3
      %p229 = por %p227, %p228
      %p230 = scmp.ne.s32.totalorder %s219, %s220
      %p231 = scmp.eq.s32.totalorder %s33, 0
      %p232 = por %p230, %p231
      %p233 = scmp.ne.s32.totalorder %s219, %s220
      %p234 = scmp.eq.s32.totalorder %s34, 3
      %p235 = por %p233, %p234
      %p237 = scmp.ne.s32.totalorder %s220, %s236
      %p238 = scmp.eq.s32.totalorder %s34, 0
      %p239 = por %p237, %p238
      %s240 = sadd.s32 %s36, 1
      %s241 = smul.u32 %s240, 2
      %p242 = scmp.lt.s32.totalorder %s241, 3
      %s243 = scalar_select %p242, %s241, 3
      %s244 = sadd.s32 %s43, 1
      %s245 = smul.u32 %s244, 2
      %p246 = scmp.lt.s32.totalorder %s245, 3
      %s247 = scalar_select %p246, %s245, 3
      %s248 = ssub.s32 %s35, %s47
      %s249 = ssub.s32 %s243, %s247
      %s250 = sor.u32 %s248, %s249
      %p251 = scmp.eq.s32.totalorder %s250, 0
      %s253 = sadd.s32 %s252, 1
      %s254 = scalar_select %p251, %s252, %s253
      %p257 = pneg %p251
      %p258 = scmp.eq.s32.totalorder %s28, 3
      %p259 = por %p257, %p258
      %p260 = scmp.ne.s32.totalorder %s252, %s255
      %p261 = scmp.eq.s32.totalorder %s28, 0
      %p262 = por %p260, %p261
      %p263 = scmp.ne.s32.totalorder %s252, %s255
      %p264 = scmp.eq.s32.totalorder %s33, 3
      %p265 = por %p263, %p264
      %p266 = scmp.ne.s32.totalorder %s255, %s256
      %p267 = scmp.eq.s32.totalorder %s33, 0
      %p268 = por %p266, %p267
      %p269 = scmp.ne.s32.totalorder %s255, %s256
      %p270 = scmp.eq.s32.totalorder %s34, 3
      %p271 = por %p269, %p270
      %p273 = scmp.ne.s32.totalorder %s256, %s272
      %p274 = scmp.eq.s32.totalorder %s34, 0
      %p275 = por %p273, %p274
      %s276 = smul.u32 %s35, 2
      %s277 = sadd.s32 %s276, %s36
      %s278 = smul.u32 %s47, 2
      %s279 = sadd.s32 %s278, %s43
      %s280 = ssub.s32 %s277, %s279
      %p281 = scmp.eq.s32.totalorder %s280, 0
      %s283 = sadd.s32 %s282, 1
      %s284 = scalar_select %p281, %s282, %s283
      %p287 = pneg %p281
      %p288 = scmp.eq.s32.totalorder %s28, 3
      %p289 = por %p287, %p288
      %p290 = scmp.ne.s32.totalorder %s282, %s285
      %p291 = scmp.eq.s32.totalorder %s28, 0
      %p292 = por %p290, %p291
      %p293 = scmp.ne.s32.totalorder %s282, %s285
      %p294 = scmp.eq.s32.totalorder %s33, 3
      %p295 = por %p293, %p294
      %p296 = scmp.ne.s32.totalorder %s285, %s286
      %p297 = scmp.eq.s32.totalorder %s33, 0
      %p298 = por %p296, %p297
      %p299 = scmp.ne.s32.totalorder %s285, %s286
      %p300 = scmp.eq.s32.totalorder %s34, 3
      %p301 = por %p299, %p300
      %p303 = scmp.ne.s32.totalorder %s286, %s302
      %p304 = scmp.eq.s32.totalorder %s34, 0
      %p305 = por %p303, %p304
      %p306 = scmp.le.s32.totalorder 1, %s28
      %p307 = scmp.lt.s32.totalorder %s28, 5
      %p308 = pnand %p306, %p307
      %p309 = pneg %p308
      // Predicated region
      $region9: #{tpu_custom_call.1} parent=5 // pred_check
        _
      $region10: #{tpu_custom_call.1} parent=5 // pred_check_branch
        %311 = sbr.rel (%p308) target = $region12
      $region11: #{tpu_custom_call.1} parent=5 // pred_region
        %s312 = ssub.s32 %s28, 1
      $region12: #{tpu_custom_call.1} parent=5 // pred_fallthru
        _
      %p313 = scmp.lt.s32.totalorder %s28, 4
      // Predicated region
      $region13: #{tpu_custom_call.1} parent=5 // pred_check
        %p314 = pneg %p313
      $region14: #{tpu_custom_call.1} parent=5 // pred_check_branch
        %316 = sbr.rel (%p314) target = $region16
      $region15: #{tpu_custom_call.1} parent=5 // pred_region
        // Predicated region
        $region17: #{tpu_custom_call.1} parent=15 // pred_check
          %p317 = pneg %p62
        $region18: #{tpu_custom_call.1} parent=15 // pred_check_branch
          %319 = sbr.rel (%p317) target = $region20
        $region19: #{tpu_custom_call.1} parent=15 // pred_region
          %s320 = sand.u32 %s52, 1
          %s321 = scalar_lea.sflag [#allocation3], %s320
          %s322 = sand.u32 %s52, 1
          %s323 = smul.addr %s322, 16
          %s324 = scalar_lea.vmem [#allocation2], %s323
          %s325 = smul.u32 2, %s36
          %s327 = ssub.s32 256, 256
          %328 = vsyncadd %s321, %s327
          %s329 = smul.addr %s35, 4
          %s330 = sadd.s32 %s325, %s329
          %s331 = smul.addr %s330, 128
          %s332 = scalar_lea.hbm %s0, %s331
          %s333 = sshll.u32 %s324, 4
          %s334 = int_to_ptr.vmem [resolvable:$true] %s333
          %339 = dma.hbm_to_vmem [thread:$0]  %s332, 256, %s334, %s321, 128, 128, 8
        $region20: #{tpu_custom_call.1} parent=15 // pred_fallthru
          _
        // Predicated region
        $region21: #{tpu_custom_call.1} parent=15 // pred_check
          %p340 = pneg %p90
        $region22: #{tpu_custom_call.1} parent=15 // pred_check_branch
          %342 = sbr.rel (%p340) target = $region24
        $region23: #{tpu_custom_call.1} parent=15 // pred_region
          %s343 = sand.u32 %s28, 1
          %s344 = scalar_lea.sflag [#allocation6], %s343
          %s345 = sand.u32 %s80, 1
          %s346 = smul.addr %s345, 16
          %s347 = scalar_lea.vmem [#allocation5], %s346
          %s348 = smul.u32 2, %s36
          %s350 = ssub.s32 256, 256
          %351 = vsyncadd %s344, %s350
          %s352 = smul.addr %s35, 4
          %s353 = sadd.s32 %s348, %s352
          %s354 = smul.addr %s353, 128
          %s355 = scalar_lea.hbm %s1, %s354
          %s356 = sshll.u32 %s347, 4
          %s357 = int_to_ptr.vmem [resolvable:$true] %s356
          %362 = dma.hbm_to_vmem [thread:$0]  %s355, 256, %s357, %s344, 128, 128, 8
        $region24: #{tpu_custom_call.1} parent=15 // pred_fallthru
          _
        // Predicated region
        $region25: #{tpu_custom_call.1} parent=15 // pred_check
          %p363 = pneg %p118
        $region26: #{tpu_custom_call.1} parent=15 // pred_check_branch
          %365 = sbr.rel (%p363) target = $region28
        $region27: #{tpu_custom_call.1} parent=15 // pred_region
          %s366 = sand.u32 %s28, 1
          %s367 = scalar_lea.sflag [#allocation6], %s366
          %s368 = sand.u32 %s108, 1
          %s369 = smul.addr %s368, 16
          %s370 = scalar_lea.vmem [#allocation7], %s369
          %s371 = smul.u32 2, %s36
          %s373 = ssub.s32 256, 256
          %374 = vsyncadd %s367, %s373
          %s375 = smul.addr %s35, 4
          %s376 = sadd.s32 %s371, %s375
          %s377 = smul.addr %s376, 128
          %s378 = scalar_lea.hbm %s2, %s377
          %s379 = sshll.u32 %s370, 4
          %s380 = int_to_ptr.vmem [resolvable:$true] %s379
          %385 = dma.hbm_to_vmem [thread:$0]  %s378, 256, %s380, %s367, 128, 128, 8
        $region28: #{tpu_custom_call.1} parent=15 // pred_fallthru
          _
        // Predicated region
        $region29: #{tpu_custom_call.1} parent=15 // pred_check
          %p386 = pneg %p154
        $region30: #{tpu_custom_call.1} parent=15 // pred_check_branch
          %388 = sbr.rel (%p386) target = $region32
        $region31: #{tpu_custom_call.1} parent=15 // pred_region
          %s389 = sand.u32 %s28, 1
          %s390 = scalar_lea.sflag [#allocation9], %s389
          %s391 = sand.u32 %s144, 1
          %s392 = smul.addr %s391, 8
          %s393 = scalar_lea.vmem [#allocation8], %s392
          %s394 = smul.u32 %s36, 2
          %s395 = ssub.s32 %s394, 1
          %p396 = scmp.gt.s32.totalorder %s395, 0
          %s397 = scalar_select %p396, %s395, 0
          %s399 = ssub.s32 128, 128
          %400 = vsyncadd %s390, %s399
          %s401 = smul.addr %s35, 4
          %s402 = sadd.s32 %s397, %s401
          %s403 = smul.addr %s402, 128
          %s404 = scalar_lea.hbm %s3, %s403
          %s406 = sshll.u32 %s393, 4
          %s407 = int_to_ptr.vmem [resolvable:$true] %s406
          %409 = dma.hbm_to_vmem [thread:$0]  %s404, 128, %s407, %s390
        $region32: #{tpu_custom_call.1} parent=15 // pred_fallthru
          _
        // Predicated region
        $region33: #{tpu_custom_call.1} parent=15 // pred_check
          %p410 = pneg %p190
        $region34: #{tpu_custom_call.1} parent=15 // pred_check_branch
          %412 = sbr.rel (%p410) target = $region36
        $region35: #{tpu_custom_call.1} parent=15 // pred_region
          %s413 = sand.u32 %s28, 1
          %s414 = scalar_lea.sflag [#allocation9], %s413
          %s415 = sand.u32 %s180, 1
          %s416 = smul.addr %s415, 8
          %s417 = scalar_lea.vmem [#allocation10], %s416
          %s418 = smul.u32 %s36, 2
          %s419 = ssub.s32 %s418, 1
          %p420 = scmp.gt.s32.totalorder %s419, 0
          %s421 = scalar_select %p420, %s419, 0
          %s423 = ssub.s32 128, 128
          %424 = vsyncadd %s414, %s423
          %s425 = smul.addr %s35, 4
          %s426 = sadd.s32 %s421, %s425
          %s427 = smul.addr %s426, 128
          %s428 = scalar_lea.hbm %s4, %s427
          %s430 = sshll.u32 %s417, 4
          %s431 = int_to_ptr.vmem [resolvable:$true] %s430
          %433 = dma.hbm_to_vmem [thread:$0]  %s428, 128, %s431, %s414
        $region36: #{tpu_custom_call.1} parent=15 // pred_fallthru
          _
        // Predicated region
        $region37: #{tpu_custom_call.1} parent=15 // pred_check
          %p434 = pneg %p226
        $region38: #{tpu_custom_call.1} parent=15 // pred_check_branch
          %436 = sbr.rel (%p434) target = $region40
        $region39: #{tpu_custom_call.1} parent=15 // pred_region
          %s437 = sand.u32 %s28, 1
          %s438 = scalar_lea.sflag [#allocation12], %s437
          %s439 = sand.u32 %s216, 1
          %s440 = smul.addr %s439, 8
          %s441 = scalar_lea.vmem [#allocation11], %s440
          %s442 = sadd.s32 %s36, 1
          %s443 = smul.u32 %s442, 2
          %p444 = scmp.lt.s32.totalorder %s443, 3
          %s445 = scalar_select %p444, %s443, 3
          %s447 = ssub.s32 128, 128
          %448 = vsyncadd %s438, %s447
          %s449 = smul.addr %s35, 4
          %s450 = sadd.s32 %s445, %s449
          %s451 = smul.addr %s450, 128
          %s452 = scalar_lea.hbm %s5, %s451
          %s454 = sshll.u32 %s441, 4
          %s455 = int_to_ptr.vmem [resolvable:$true] %s454
          %457 = dma.hbm_to_vmem [thread:$0]  %s452, 128, %s455, %s438
        $region40: #{tpu_custom_call.1} parent=15 // pred_fallthru
          _
        // Predicated region
        $region41: #{tpu_custom_call.1} parent=15 // pred_check
          %p458 = pneg %p262
        $region42: #{tpu_custom_call.1} parent=15 // pred_check_branch
          %460 = sbr.rel (%p458) target = $region44
        $region43: #{tpu_custom_call.1} parent=15 // pred_region
          %s461 = sand.u32 %s28, 1
          %s462 = scalar_lea.sflag [#allocation12], %s461
          %s463 = sand.u32 %s252, 1
          %s464 = smul.addr %s463, 8
          %s465 = scalar_lea.vmem [#allocation13], %s464
          %s466 = sadd.s32 %s36, 1
          %s467 = smul.u32 %s466, 2
          %p468 = scmp.lt.s32.totalorder %s467, 3
          %s469 = scalar_select %p468, %s467, 3
          %s471 = ssub.s32 128, 128
          %472 = vsyncadd %s462, %s471
          %s473 = smul.addr %s35, 4
          %s474 = sadd.s32 %s469, %s473
          %s475 = smul.addr %s474, 128
          %s476 = scalar_lea.hbm %s6, %s475
          %s478 = sshll.u32 %s465, 4
          %s479 = int_to_ptr.vmem [resolvable:$true] %s478
          %481 = dma.hbm_to_vmem [thread:$0]  %s476, 128, %s479, %s462
        $region44: #{tpu_custom_call.1} parent=15 // pred_fallthru
          _
      $region16: #{tpu_custom_call.1} parent=5 // pred_fallthru
        _
      %p482 = scmp.le.s32.totalorder 1, %s28
      %p483 = scmp.lt.s32.totalorder %s28, 5
      %p484 = pnand %p482, %p483
      %p485 = pneg %p484
      // Predicated region
      $region45: #{tpu_custom_call.1} parent=5 // pred_check
        _
      $region46: #{tpu_custom_call.1} parent=5 // pred_check_branch
        %487 = sbr.rel (%p484) target = $region48
      $region47: #{tpu_custom_call.1} parent=5 // pred_region
        %s488 = ssub.s32 %s28, 1
        %s489 = sand.u32 %s55, 1
        %s490 = scalar_lea.sflag [#allocation3], %s489
        %s491 = sand.u32 %s55, 1
        %s492 = smul.addr %s491, 16
        %s493 = scalar_lea.vmem [#allocation2], %s492
        // Predicated region
        $region49: #{tpu_custom_call.1} parent=47 // pred_check
          %p494 = pneg %p68
        $region50: #{tpu_custom_call.1} parent=47 // pred_check_branch
          %496 = sbr.rel (%p494) target = $region52
        $region51: #{tpu_custom_call.1} parent=47 // pred_region
          %497 = dma.done %s490, 256
        $region52: #{tpu_custom_call.1} parent=47 // pred_fallthru
          _
        %s498 = sand.u32 %s33, 1
        %s499 = scalar_lea.sflag [#allocation6], %s498
        %s500 = sand.u32 %s83, 1
        %s501 = smul.addr %s500, 16
        %s502 = scalar_lea.vmem [#allocation5], %s501
        // Predicated region
        $region53: #{tpu_custom_call.1} parent=47 // pred_check
          %p503 = pneg %p96
        $region54: #{tpu_custom_call.1} parent=47 // pred_check_branch
          %505 = sbr.rel (%p503) target = $region56
        $region55: #{tpu_custom_call.1} parent=47 // pred_region
          %506 = dma.done %s499, 256
        $region56: #{tpu_custom_call.1} parent=47 // pred_fallthru
          _
        %s507 = sand.u32 %s33, 1
        %s508 = scalar_lea.sflag [#allocation6], %s507
        %s509 = sand.u32 %s111, 1
        %s510 = smul.addr %s509, 16
        %s511 = scalar_lea.vmem [#allocation7], %s510
        // Predicated region
        $region57: #{tpu_custom_call.1} parent=47 // pred_check
          %p512 = pneg %p124
        $region58: #{tpu_custom_call.1} parent=47 // pred_check_branch
          %514 = sbr.rel (%p512) target = $region60
        $region59: #{tpu_custom_call.1} parent=47 // pred_region
          %515 = dma.done %s508, 256
        $region60: #{tpu_custom_call.1} parent=47 // pred_fallthru
          _
        %s516 = sand.u32 %s33, 1
        %s517 = scalar_lea.sflag [#allocation9], %s516
        %s518 = sand.u32 %s147, 1
        %s519 = smul.addr %s518, 8
        %s520 = scalar_lea.vmem [#allocation8], %s519
        // Predicated region
        $region61: #{tpu_custom_call.1} parent=47 // pred_check
          %p521 = pneg %p160
        $region62: #{tpu_custom_call.1} parent=47 // pred_check_branch
          %523 = sbr.rel (%p521) target = $region64
        $region63: #{tpu_custom_call.1} parent=47 // pred_region
          %524 = dma.done %s517, 128
        $region64: #{tpu_custom_call.1} parent=47 // pred_fallthru
          _
        %s525 = sand.u32 %s33, 1
        %s526 = scalar_lea.sflag [#allocation9], %s525
        %s527 = sand.u32 %s183, 1
        %s528 = smul.addr %s527, 8
        %s529 = scalar_lea.vmem [#allocation10], %s528
        // Predicated region
        $region65: #{tpu_custom_call.1} parent=47 // pred_check
          %p530 = pneg %p196
        $region66: #{tpu_custom_call.1} parent=47 // pred_check_branch
          %532 = sbr.rel (%p530) target = $region68
        $region67: #{tpu_custom_call.1} parent=47 // pred_region
          %533 = dma.done %s526, 128
        $region68: #{tpu_custom_call.1} parent=47 // pred_fallthru
          _
        %s534 = sand.u32 %s33, 1
        %s535 = scalar_lea.sflag [#allocation12], %s534
        %s536 = sand.u32 %s219, 1
        %s537 = smul.addr %s536, 8
        %s538 = scalar_lea.vmem [#allocation11], %s537
        // Predicated region
        $region69: #{tpu_custom_call.1} parent=47 // pred_check
          %p539 = pneg %p232
        $region70: #{tpu_custom_call.1} parent=47 // pred_check_branch
          %541 = sbr.rel (%p539) target = $region72
        $region71: #{tpu_custom_call.1} parent=47 // pred_region
          %542 = dma.done %s535, 128
        $region72: #{tpu_custom_call.1} parent=47 // pred_fallthru
          _
        %s543 = sand.u32 %s33, 1
        %s544 = scalar_lea.sflag [#allocation12], %s543
        %s545 = sand.u32 %s255, 1
        %s546 = smul.addr %s545, 8
        %s547 = scalar_lea.vmem [#allocation13], %s546
        // Predicated region
        $region73: #{tpu_custom_call.1} parent=47 // pred_check
          %p548 = pneg %p268
        $region74: #{tpu_custom_call.1} parent=47 // pred_check_branch
          %550 = sbr.rel (%p548) target = $region76
        $region75: #{tpu_custom_call.1} parent=47 // pred_region
          %551 = dma.done %s544, 128
        $region76: #{tpu_custom_call.1} parent=47 // pred_fallthru
          _
        %s552 = sand.u32 %s55, 1
        %s553 = scalar_lea.sflag [#allocation3], %s552
        %s554 = sand.u32 %s55, 1
        %s555 = smul.addr %s554, 16
        %s556 = scalar_lea.vmem [#allocation2], %s555
        %p557 = pneg %p68
        %p558 = pneg %p65
        %s559 = sand.u32 %s33, 1
        %s560 = scalar_lea.sflag [#allocation6], %s559
        %s561 = sand.u32 %s83, 1
        %s562 = smul.addr %s561, 16
        %s563 = scalar_lea.vmem [#allocation5], %s562
        %p564 = pneg %p96
        %p565 = pneg %p93
        %s566 = sand.u32 %s33, 1
        %s567 = scalar_lea.sflag [#allocation6], %s566
        %s568 = sand.u32 %s111, 1
        %s569 = smul.addr %s568, 16
        %s570 = scalar_lea.vmem [#allocation7], %s569
        %p571 = pneg %p124
        %p572 = pneg %p121
        %s573 = sand.u32 %s33, 1
        %s574 = scalar_lea.sflag [#allocation9], %s573
        %s575 = sand.u32 %s147, 1
        %s576 = smul.addr %s575, 8
        %s577 = scalar_lea.vmem [#allocation8], %s576
        %p578 = pneg %p160
        %p579 = pneg %p157
        %s580 = sand.u32 %s33, 1
        %s581 = scalar_lea.sflag [#allocation9], %s580
        %s582 = sand.u32 %s183, 1
        %s583 = smul.addr %s582, 8
        %s584 = scalar_lea.vmem [#allocation10], %s583
        %p585 = pneg %p196
        %p586 = pneg %p193
        %s587 = sand.u32 %s33, 1
        %s588 = scalar_lea.sflag [#allocation12], %s587
        %s589 = sand.u32 %s219, 1
        %s590 = smul.addr %s589, 8
        %s591 = scalar_lea.vmem [#allocation11], %s590
        %p592 = pneg %p232
        %p593 = pneg %p229
        %s594 = sand.u32 %s33, 1
        %s595 = scalar_lea.sflag [#allocation12], %s594
        %s596 = sand.u32 %s255, 1
        %s597 = smul.addr %s596, 8
        %s598 = scalar_lea.vmem [#allocation13], %s597
        %p599 = pneg %p268
        %p600 = pneg %p265
        %p601 = pneg %p298
        %p602 = pneg %p295
        %s603 = sand.u32 %s285, 1
        %s604 = scalar_lea.sflag [#allocation4], %s603
        %s605 = sand.u32 %s285, 1
        %s606 = smul.addr %s605, 8
        %s607 = scalar_lea.vmem [#allocation14], %s606
        %s608 = smul.u32 2, %s38
        %s609 = smul.u32 2, %s38
        %s610 = smul.u32 2, %s38
        %s611 = smul.u32 %s38, 2
        %s612 = ssub.s32 %s611, 1
        %p613 = scmp.gt.s32.totalorder %s612, 0
        %s614 = scalar_select %p613, %s612, 0
        %s615 = smul.u32 %s38, 2
        %s616 = ssub.s32 %s615, 1
        %p617 = scmp.gt.s32.totalorder %s616, 0
        %s618 = scalar_select %p617, %s616, 0
        %s619 = sadd.s32 %s38, 1
        %s620 = smul.u32 %s619, 2
        %p621 = scmp.lt.s32.totalorder %s620, 3
        %s622 = scalar_select %p621, %s620, 3
        %s623 = sadd.s32 %s38, 1
        %s624 = smul.u32 %s623, 2
        %p625 = scmp.lt.s32.totalorder %s624, 3
        %s626 = scalar_select %p625, %s624, 3
        %s627 = smul.u32 %s37, 2
        %s628 = sadd.s32 %s627, %s38
        %v629 = vld [vmem:[%s493] sm:$0xff]
        %v630 = vld [vmem:[%s493 + $0x8] sm:$0xff]
        %v631 = vld [vmem:[%s511] sm:$0xff]
        %v632 = vld [vmem:[%s511 + $0x8] sm:$0xff]
        %v633 = vsub.f32 %v629, %v631
        %v634 = vsub.f32 %v630, %v632
        %v635 = vand.u32 2147483647, %v633
        %v636 = vand.u32 2147483647, %v634
        %vm637 = vcmp.lt.f32.partialorder %v635, 0.25
        %vm638 = vcmp.lt.f32.partialorder %v636, 0.25
        %v639 = vsel %vm637, 1, 0
        %v640 = vsel %vm638, 1, 0
        %v641 = vcvt.s32.f32 %v639
        %v642 = vcvt.s32.f32 %v640
        %v643 = vld [vmem:[%s520] sm:$0xff]
        %v644 = vld [vmem:[%s529] sm:$0xff]
        %v645 = vsub.f32 %v643, %v644
        %v646 = vand.u32 2147483647, %v645
        %vm647 = vcmp.lt.f32.partialorder %v646, 0.25
        %v648 = vsel %vm647, 1, 0
        %v649 = vcvt.s32.f32 %v648
        %v650 = vld [vmem:[%s538] sm:$0xff]
        %v651 = vld [vmem:[%s547] sm:$0xff]
        %v652 = vsub.f32 %v650, %v651
        %v653 = vand.u32 2147483647, %v652
        %vm654 = vcmp.lt.f32.partialorder %v653, 0.25
        %v655 = vsel %vm654, 1, 0
        %v656 = vcvt.s32.f32 %v655
        %v657 = vlaneseq
        %v658 = vshrl.u32 %v657, 7
        %v659 = vadd.s32 %v658, 8
        %v660 = vadd.s32 %v658, 16
        %v661 = vadd.s32 %v658, 24
        %s662 = smul.u32 %s38, 16
        %s663 = ssub.s32 %s662, 8
        %v664 = vstv %s663
        %v665 = vadd.s32 %v658, %v664
        %v666 = vadd.s32 %v659, %v664
        %v667 = vadd.s32 %v660, %v664
        %v668 = vadd.s32 %v661, %v664
        %vm669 = vcmp.lt.s32.totalorder %v665, 0
        %vm670 = vcmp.lt.s32.totalorder %v666, 0
        %vm671 = vcmp.lt.s32.totalorder %v667, 0
        %vm672 = vcmp.lt.s32.totalorder %v668, 0
        %vm673 = vcmp.ge.s32.totalorder %v665, 32
        %vm674 = vcmp.ge.s32.totalorder %v666, 32
        %vm675 = vcmp.ge.s32.totalorder %v667, 32
        %vm676 = vcmp.ge.s32.totalorder %v668, 32
        %vm677 = vmor %vm669, %vm673
        %vm678 = vmor %vm670, %vm674
        %vm679 = vmor %vm671, %vm675
        %vm680 = vmor %vm672, %vm676
        %v681 = vlaneseq
        %v682 = vand.u32 %v681, 127
        %vm683 = vcmp.eq.s32.totalorder %v682, 0
        %vm684 = vcmp.eq.s32.totalorder %v682, 127
        %v685 = vsel %vm677, 1.0, %v649
        %v686 = vsel %vm678, 1.0, %v641
        %v687 = vsel %vm679, 1.0, %v642
        %v688 = vsel %vm680, 1.0, %v656
        %689 = vrot.lane.b32.xlu0 %v685, 1
        %v690 = vpop.permute.xlu0 %689
        %691 = vrot.lane.b32.xlu0 %v686, 1
        %v692 = vpop.permute.xlu0 %691
        %693 = vrot.lane.b32.xlu0 %v687, 1
        %v694 = vpop.permute.xlu0 %693
        %695 = vrot.lane.b32.xlu0 %v688, 1
        %v696 = vpop.permute.xlu0 %695
        %v697 = vsel %vm683, 1.0, %v690
        %v698 = vsel %vm683, 1.0, %v692
        %v699 = vsel %vm683, 1.0, %v694
        %v700 = vsel %vm683, 1.0, %v696
        %701 = vrot.lane.b32.xlu0 %v685, 127
        %v702 = vpop.permute.xlu0 %701
        %703 = vrot.lane.b32.xlu0 %v686, 127
        %v704 = vpop.permute.xlu0 %703
        %705 = vrot.lane.b32.xlu0 %v687, 127
        %v706 = vpop.permute.xlu0 %705
        %707 = vrot.lane.b32.xlu0 %v688, 127
        %v708 = vpop.permute.xlu0 %707
        %v709 = vsel %vm684, 1.0, %v702
        %v710 = vsel %vm684, 1.0, %v704
        %v711 = vsel %vm684, 1.0, %v706
        %v712 = vsel %vm684, 1.0, %v708
        %v713 = vmin.f32 %v697, %v685
        %v714 = vmin.f32 %v698, %v686
        %v715 = vmin.f32 %v699, %v687
        %v716 = vmin.f32 %v700, %v688
        %v717 = vmin.f32 %v713, %v709
        %v718 = vmin.f32 %v714, %v710
        %v719 = vmin.f32 %v715, %v711
        %v720 = vmin.f32 %v716, %v712
        %v721 = vrot.slane %v717, 7
        %v722 = vrot.slane %v718, 7
        %v723 = vrot.slane %v719, 7
        %v724 = vrot.slane %v720, 7
        %vm725 = vcmp.lt.s32.totalorder %v658, 1
        %v726 = vsel %vm725, %v723, %v724
        %v727 = vsel %vm725, %v722, %v723
        %v728 = vsel %vm725, %v721, %v722
        %v729 = vsel %vm725, %v724, %v721
        %v730 = vmin.f32 %v729, %v717
        %v731 = vmin.f32 %v728, %v718
        %v732 = vmin.f32 %v727, %v719
        %v733 = vmin.f32 %v726, %v720
        %v734 = vrot.slane %v717, 1
        %v735 = vrot.slane %v718, 1
        %v736 = vrot.slane %v719, 1
        %v737 = vrot.slane %v720, 1
        %vm738 = vcmp.lt.s32.totalorder %v658, 7
        %v739 = vsel %vm738, %v736, %v737
        %v740 = vsel %vm738, %v735, %v736
        %v741 = vsel %vm738, %v734, %v735
        %v742 = vsel %vm738, %v737, %v734
        %v743 = vmin.f32 %v730, %v741
        %v744 = vmin.f32 %v731, %v740
        %v745 = vmin.f32 %v732, %v739
        %v746 = vmin.f32 %v733, %v742
        %v747 = vsel %vm677, 0.0, %v743
        %v748 = vsel %vm678, 0.0, %v744
        %v749 = vsel %vm679, 0.0, %v745
        %v750 = vsel %vm680, 0.0, %v746
        %751 = vrot.lane.b32.xlu0 %v747, 1
        %v752 = vpop.permute.xlu0 %751
        %753 = vrot.lane.b32.xlu0 %v748, 1
        %v754 = vpop.permute.xlu0 %753
        %755 = vrot.lane.b32.xlu0 %v749, 1
        %v756 = vpop.permute.xlu0 %755
        %757 = vrot.lane.b32.xlu0 %v750, 1
        %v758 = vpop.permute.xlu0 %757
        %v759 = vsel %vm683, 0.0, %v752
        %v760 = vsel %vm683, 0.0, %v754
        %v761 = vsel %vm683, 0.0, %v756
        %v762 = vsel %vm683, 0.0, %v758
        %763 = vrot.lane.b32.xlu0 %v747, 127
        %v764 = vpop.permute.xlu0 %763
        %765 = vrot.lane.b32.xlu0 %v748, 127
        %v766 = vpop.permute.xlu0 %765
        %767 = vrot.lane.b32.xlu0 %v749, 127
        %v768 = vpop.permute.xlu0 %767
        %769 = vrot.lane.b32.xlu0 %v750, 127
        %v770 = vpop.permute.xlu0 %769
        %v771 = vsel %vm684, 0.0, %v764
        %v772 = vsel %vm684, 0.0, %v766
        %v773 = vsel %vm684, 0.0, %v768
        %v774 = vsel %vm684, 0.0, %v770
        %v775 = vmax.f32 %v759, %v747
        %v776 = vmax.f32 %v760, %v748
        %v777 = vmax.f32 %v761, %v749
        %v778 = vmax.f32 %v762, %v750
        %v779 = vmax.f32 %v775, %v771
        %v780 = vmax.f32 %v776, %v772
        %v781 = vmax.f32 %v777, %v773
        %v782 = vmax.f32 %v778, %v774
        %v783 = vrot.slane %v779, 7
        %v784 = vrot.slane %v780, 7
        %v785 = vrot.slane %v781, 7
        %v786 = vsel %vm725, %v784, %v785
        %v787 = vsel %vm725, %v783, %v784
        %v788 = vmax.f32 %v787, %v780
        %v789 = vmax.f32 %v786, %v781
        %v790 = vrot.slane %v780, 1
        %v791 = vrot.slane %v781, 1
        %v792 = vrot.slane %v782, 1
        %v793 = vsel %vm738, %v791, %v792
        %v794 = vsel %vm738, %v790, %v791
        %v795 = vmax.f32 %v788, %v794
        %v796 = vmax.f32 %v789, %v793
        %v797 = vld [vmem:[%s502] sm:$0xff]
        %v798 = vld [vmem:[%s502 + $0x8] sm:$0xff]
        %vm799 = vcmp.gt.f32.partialorder %v795, 0.5
        %vm800 = vcmp.gt.f32.partialorder %v796, 0.5
        %vm801 = vcmp.gt.f32.partialorder %v797, 0.95
        %vm802 = vcmp.gt.f32.partialorder %v798, 0.95
        %vm803 = vmand %vm799, %vm801
        %vm804 = vmand %vm800, %vm802
        %vm805 = vmxor %vm799, 1
        %vm806 = vmxor %vm800, 1
        %vm807 = vcmp.lt.f32.partialorder %v797, 0.05
        %vm808 = vcmp.lt.f32.partialorder %v798, 0.05
        %vm809 = vmand %vm805, %vm807
        %vm810 = vmand %vm806, %vm808
        %vm811 = vmor %vm803, %vm809
        %vm812 = vmor %vm804, %vm810
        %v813 = vsub.f32 1.0, %v797
        %v814 = vsub.f32 1.0, %v798
        %v815 = vsel %vm799, %v797, %v813
        %v816 = vsel %vm800, %v798, %v814
        %v817 = vlog2.pop %v815
        %v818 = vmul.f32 %v817, 0.6931472
        %v819 = vlog2.pop %v816
        %v820 = vmul.f32 %v819, 0.6931472
        %v821 = vmax.f32 %v818, -100.0
        %v822 = vmax.f32 %v820, -100.0
        %v823 = vsub.f32 0.0, %v821
        %v824 = vsub.f32 0.0, %v822
        %v825 = vsel %vm811, 0.0, %v823
        %v826 = vsel %vm812, 0.0, %v824
        %v827 = vadd.f32 %v825, %v826
        %828 = vst [vmem:[%s607] sm:$0xff] %v827
        %s829 = sand.u32 %s285, 1
        %s830 = scalar_lea.sflag [#allocation4], %s829
        %s831 = sand.u32 %s285, 1
        %s832 = smul.addr %s831, 8
        %s833 = scalar_lea.vmem [#allocation14], %s832
        // Predicated region
        $region77: #{tpu_custom_call.1} parent=47 // pred_check
          %p834 = pneg %p295
        $region78: #{tpu_custom_call.1} parent=47 // pred_check_branch
          %836 = sbr.rel (%p834) target = $region80
        $region79: #{tpu_custom_call.1} parent=47 // pred_region
          %s837 = smul.u32 %s37, 2
          %s838 = sadd.s32 %s837, %s38
          %s840 = ssub.s32 128, 128
          %841 = vsyncadd %s830, %s840
          %s842 = smul.addr %s838, 128
          %s843 = scalar_lea.hbm %s7, %s842
          %s845 = sshll.u32 %s833, 4
          %s846 = int_to_ptr.vmem [resolvable:$true] %s845
          %848 = dma.vmem_to_hbm [thread:$0]  %s846, 128, %s843, %s830
        $region80: #{tpu_custom_call.1} parent=47 // pred_fallthru
          _
      $region48: #{tpu_custom_call.1} parent=5 // pred_fallthru
        _
      %p849 = scmp.le.s32.totalorder 2, %s28
      // Predicated region
      $region81: #{tpu_custom_call.1} parent=5 // pred_check
        %p850 = pneg %p849
      $region82: #{tpu_custom_call.1} parent=5 // pred_check_branch
        %852 = sbr.rel (%p850) target = $region84
      $region83: #{tpu_custom_call.1} parent=5 // pred_region
        %s853 = ssub.s32 %s28, 2
        // Predicated region
        $region85: #{tpu_custom_call.1} parent=83 // pred_check
          %p854 = pneg %p301
        $region86: #{tpu_custom_call.1} parent=83 // pred_check_branch
          %856 = sbr.rel (%p854) target = $region88
        $region87: #{tpu_custom_call.1} parent=83 // pred_region
          %s857 = sand.u32 %s286, 1
          %s858 = scalar_lea.sflag [#allocation4], %s857
          %s859 = sand.u32 %s286, 1
          %s860 = smul.addr %s859, 8
          %s861 = scalar_lea.vmem [#allocation14], %s860
          %862 = dma.done %s858, 128
        $region88: #{tpu_custom_call.1} parent=83 // pred_fallthru
          _
      $region84: #{tpu_custom_call.1} parent=5 // pred_fallthru
        _
    $region6: #{tpu_custom_call.1} parent=1 // loop_footer
      %s32 = sadd.s32 1, %s28
    $region7: #{tpu_custom_call.1} parent=1 // loop_footer_branch
      %27 = sbr.rel target = $region3
    $region8: #{tpu_custom_call.1} parent=1 // loop_exit
      _
    %863 = vsyncpa [#allocation3], 1
    %s864 = scalar_lea.sflag [#allocation3], 1
    %865 = vsyncpa %s864, 1
    %866 = vsyncpa [#allocation6], 1
    %s867 = scalar_lea.sflag [#allocation6], 1
    %868 = vsyncpa %s867, 1
    %869 = vsyncpa [#allocation9], 1
    %s870 = scalar_lea.sflag [#allocation9], 1
    %871 = vsyncpa %s870, 1
    %872 = vsyncpa [#allocation12], 1
    %s873 = scalar_lea.sflag [#allocation12], 1
    %874 = vsyncpa %s873, 1
    %875 = vsyncpa [#allocation4], 1
    %s876 = scalar_lea.sflag [#allocation4], 1
    %877 = vsyncpa %s876, 1

</llo_original>
